<compile_context>
chip_gen: v5e
topology: v5e:2x2
jax: 0.10.0
libtpu: 0.0.40
codegen_flags: <defaults>
</compile_context>

<pallas_src>
import functools

import jax
import jax.numpy as jnp
from jax.experimental import pallas as pl
from jax.experimental.pallas import tpu as pltpu


def _series_decomp_kernel(x_ref, res_ref, mean_ref, pad_ref, *,
                          kernel_size, pad, lead):
    """x_ref/res_ref/mean_ref: (Bt, L, Ct); pad_ref: (Bt, lead+L+pad, Ct) scratch.

    `lead` is `pad` rounded up to a multiple of 8 so the interior store of x
    into the scratch is sublane-aligned; rows [0, lead-pad) are never touched.
    """
    Bt, L, Ct = x_ref.shape

    # Replicate-padded series built directly in VMEM, in the input dtype.
    pad_ref[:, pl.ds(lead, L), :] = x_ref[...]
    if pad > 0:
        first = x_ref[:, 0:1, :]
        last = x_ref[:, L - 1:L, :]
        pad_ref[:, pl.ds(lead - pad, pad), :] = jnp.broadcast_to(
            first, (Bt, pad, Ct))
        pad_ref[:, pl.ds(lead + L, pad), :] = jnp.broadcast_to(
            last, (Bt, pad, Ct))

    # Sliding-window mean: unrolled VPU adds over the static kernel_size,
    # accumulated in f32.  Seed acc from the first slice (saves one add and
    # avoids a zeros slab).
    base = lead - pad
    acc = pad_ref[:, pl.ds(base, L), :].astype(jnp.float32)
    for j in range(1, kernel_size):
        acc = acc + pad_ref[:, pl.ds(base + j, L), :].astype(jnp.float32)
    mean = acc * (1.0 / kernel_size)

    mean_ref[...] = mean.astype(mean_ref.dtype)
    res_ref[...] = (x_ref[...].astype(jnp.float32) - mean).astype(res_ref.dtype)


def _divisors(n):
    return [d for d in range(1, n + 1) if n % d == 0]


def _largest_divisor_leq(n, cap, multiple_of=1):
    best = None
    for d in _divisors(n):
        if d <= cap and d % multiple_of == 0:
            best = d
    return best


def _slab_budget_bytes():
    """Per-block byte budget for one (B_tile, L, C_tile) slab.

    Sized so (1 input + 2 output) blocks double-buffered plus the padded
    scratch stay comfortably inside the smallest default scoped-VMEM budget
    across generations (v5e: 16 MiB scoped default; v7x: 64 MiB physical).
    """
    try:  # generation-aware cap; falls back if the query is unavailable.
        vmem = pltpu.get_tpu_info().vmem_capacity_bytes
    except Exception:
        vmem = 64 * 1024 * 1024
    return max(512 * 1024, min(1024 * 1024, vmem // 64))


def series_decomp_pallas(x, kernel_size):
    """Moving-average series decomposition.

    x: (B, L, C); returns (res, moving_mean), both (B, L, C).
    Matches the PyTorch series_decomp(kernel_size) module (stride=1, odd k).
    """
    assert kernel_size >= 1 and kernel_size % 2 == 1, (
        "series_decomp requires an odd kernel_size (the PyTorch module would "
        "otherwise produce mismatched shapes for res = x - moving_mean)")
    B, L, C = x.shape
    pad = (kernel_size - 1) // 2
    lead = ((pad + 7) // 8) * 8 if pad > 0 else 0
    itemsize = x.dtype.itemsize
    budget = _slab_budget_bytes()

    # --- channel tile: must divide C exactly; lane-dense (multiple of 128)
    # whenever C allows it.  Small C (the typical series_decomp case) keeps
    # the full channel axis and folds batches instead.
    if C % 128 == 0:
        c_cap = max(128, budget // (L * itemsize))
        c_tile = _largest_divisor_leq(C, c_cap, multiple_of=128) or 128
    else:
        c_tile = C

    # --- batch tile: fold batches so each grid step moves ~`budget` bytes.
    row_bytes = L * c_tile * itemsize
    b_cap = max(1, budget // row_bytes)
    b_tile = _largest_divisor_leq(B, b_cap)
    # Keep >= 2 grid steps (megacore sharding / pipelining) when possible.
    if (B // b_tile) * (C // c_tile) < 2 and b_tile > 1:
        b_tile = max(d for d in _divisors(B) if d < b_tile)

    grid = (B // b_tile, C // c_tile)
    kernel = functools.partial(
        _series_decomp_kernel, kernel_size=kernel_size, pad=pad, lead=lead)
    blk = lambda b, c: (b, 0, c)
    block = (b_tile, L, c_tile)

    # TODO(synk): for very long L on v7x, add an L-tiling path with a 2*pad
    # halo (or a cumsum/two-slab window sum) to cut VMEM read passes at k~25.
    res, mean = pl.pallas_call(
        kernel,
        out_shape=(jax.ShapeDtypeStruct((B, L, C), x.dtype),
                   jax.ShapeDtypeStruct((B, L, C), x.dtype)),
        grid_spec=pltpu.PrefetchScalarGridSpec(
            num_scalar_prefetch=0,
            grid=grid,
            in_specs=[pl.BlockSpec(block, blk)],
            out_specs=(pl.BlockSpec(block, blk),
                       pl.BlockSpec(block, blk)),
            scratch_shapes=[pltpu.VMEM((b_tile, lead + L + pad, c_tile),
                                       x.dtype)],
        ),
        compiler_params=pltpu.CompilerParams(
            dimension_semantics=("parallel", "parallel")),
    )(x)
    return res, mean


def _series_decomp_ref(x, kernel_size):
    """Plain-JAX reference mirroring the PyTorch module exactly."""
    pad = (kernel_size - 1) // 2
    front = jnp.repeat(x[:, :1, :], pad, axis=1)
    end = jnp.repeat(x[:, -1:, :], pad, axis=1)
    xp = jnp.concatenate([front, x, end], axis=1)
    L = x.shape[1]
    windows = jnp.stack([xp[:, j:j + L, :] for j in range(kernel_size)], axis=0)
    mean = windows.mean(axis=0)
    return x - mean, mean


if __name__ == "__main__":
    key = jax.random.PRNGKey(0)

    configs = [
        # (B, L, C, kernel_size)
        (2, 16, 8, 5),      # small-C, small-L: module-sized shape
        (2, 32, 8, 25),     # pad (12) large vs L: stresses replicate padding
        (8, 24, 256, 25),   # lane-dense channels + batch folding path
    ]
    for i, (B, L, C, k) in enumerate(configs):
        kx = jax.random.fold_in(key, i)
        x = jax.random.normal(kx, (B, L, C), dtype=jnp.float32)

        res, mean = series_decomp_pallas(x, k)
        res = jax.block_until_ready(res)
        mean = jax.block_until_ready(mean)

        res_ref, mean_ref = _series_decomp_ref(x, k)
        assert res.shape == x.shape and mean.shape == x.shape
        assert jnp.allclose(mean, mean_ref, atol=1e-5, rtol=1e-5), (i, "mean mismatch")
        assert jnp.allclose(res, res_ref, atol=1e-5, rtol=1e-5), (i, "res mismatch")

    print("KERNEL_OK")
</pallas_src>

<mosaic_0001>
module attributes {stable_mosaic.version = 11 : i64} {
  func.func @_series_decomp_kernel(%arg0: i32, %arg1: i32, %arg2: memref<1x16x8xf32, #tpu.memory_space<vmem>>, %arg3: memref<1x16x8xf32, #tpu.memory_space<vmem>>, %arg4: memref<1x16x8xf32, #tpu.memory_space<vmem>>, %arg5: memref<1x26x8xf32, #tpu.memory_space<vmem>>) attributes {dimension_semantics = [#tpu.dimension_semantics<parallel>, #tpu.dimension_semantics<parallel>], iteration_bounds = array<i64: 2, 1>, scalar_prefetch = 0 : i64, scratch_operands = 1 : i64, tpu.core_type = #tpu.core_type<tc>, window_params = [{transform_indices = @transform_0, window_bounds = array<i64: 1, 16, 8>}, {transform_indices = @transform_1, window_bounds = array<i64: 1, 16, 8>}, {transform_indices = @transform_2, window_bounds = array<i64: 1, 16, 8>}]} {
    %c0 = arith.constant 0 : index
    %c0_0 = arith.constant 0 : index
    %c0_1 = arith.constant 0 : index
    %0 = vector.load %arg2[%c0, %c0_0, %c0_1] : memref<1x16x8xf32, #tpu.memory_space<vmem>>, vector<1x16x8xf32>
    %c0_2 = arith.constant 0 : index
    %c8 = arith.constant 8 : index
    %c0_3 = arith.constant 0 : index
    %1 = vector.load %arg5[%c0_2, %c8, %c0_3] : memref<1x26x8xf32, #tpu.memory_space<vmem>>, vector<1x16x8xf32>
    tpu.vector_store %arg5[%c0_2, %c8, %c0_3], %0 {strides = array<i32>} : memref<1x26x8xf32, #tpu.memory_space<vmem>>, vector<1x16x8xf32>,
    %c0_4 = arith.constant 0 : index
    %c0_5 = arith.constant 0 : index
    %c0_6 = arith.constant 0 : index
    %2 = vector.load %arg2[%c0_4, %c0_5, %c0_6] : memref<1x16x8xf32, #tpu.memory_space<vmem>>, vector<1x1x8xf32>
    %c0_7 = arith.constant 0 : index
    %c15 = arith.constant 15 : index
    %c0_8 = arith.constant 0 : index
    %3 = vector.load %arg2[%c0_7, %c15, %c0_8] : memref<1x16x8xf32, #tpu.memory_space<vmem>>, vector<1x1x8xf32>
    %4 = vector.shape_cast %2 : vector<1x1x8xf32> to vector<1x1x8xf32>
    %5 = vector.broadcast %4 : vector<1x1x8xf32> to vector<1x2x8xf32>
    %c0_9 = arith.constant 0 : index
    %c6 = arith.constant 6 : index
    %c0_10 = arith.constant 0 : index
    %6 = vector.load %arg5[%c0_9, %c6, %c0_10] : memref<1x26x8xf32, #tpu.memory_space<vmem>>, vector<1x2x8xf32>
    tpu.vector_store %arg5[%c0_9, %c6, %c0_10], %5 {strides = array<i32>} : memref<1x26x8xf32, #tpu.memory_space<vmem>>, vector<1x2x8xf32>,
    %7 = vector.shape_cast %3 : vector<1x1x8xf32> to vector<1x1x8xf32>
    %8 = vector.broadcast %7 : vector<1x1x8xf32> to vector<1x2x8xf32>
    %c0_11 = arith.constant 0 : index
    %c24 = arith.constant 24 : index
    %c0_12 = arith.constant 0 : index
    %9 = vector.load %arg5[%c0_11, %c24, %c0_12] : memref<1x26x8xf32, #tpu.memory_space<vmem>>, vector<1x2x8xf32>
    tpu.vector_store %arg5[%c0_11, %c24, %c0_12], %8 {strides = array<i32>} : memref<1x26x8xf32, #tpu.memory_space<vmem>>, vector<1x2x8xf32>,
    %c0_13 = arith.constant 0 : index
    %c6_14 = arith.constant 6 : index
    %c0_15 = arith.constant 0 : index
    %10 = vector.load %arg5[%c0_13, %c6_14, %c0_15] : memref<1x26x8xf32, #tpu.memory_space<vmem>>, vector<1x16x8xf32>
    %c0_16 = arith.constant 0 : index
    %c7 = arith.constant 7 : index
    %c0_17 = arith.constant 0 : index
    %11 = vector.load %arg5[%c0_16, %c7, %c0_17] : memref<1x26x8xf32, #tpu.memory_space<vmem>>, vector<1x16x8xf32>
    %12 = arith.addf %10, %11 : vector<1x16x8xf32>
    %c0_18 = arith.constant 0 : index
    %c8_19 = arith.constant 8 : index
    %c0_20 = arith.constant 0 : index
    %13 = vector.load %arg5[%c0_18, %c8_19, %c0_20] : memref<1x26x8xf32, #tpu.memory_space<vmem>>, vector<1x16x8xf32>
    %14 = arith.addf %12, %13 : vector<1x16x8xf32>
    %c0_21 = arith.constant 0 : index
    %c9 = arith.constant 9 : index
    %c0_22 = arith.constant 0 : index
    %15 = vector.load %arg5[%c0_21, %c9, %c0_22] : memref<1x26x8xf32, #tpu.memory_space<vmem>>, vector<1x16x8xf32>
    %16 = arith.addf %14, %15 : vector<1x16x8xf32>
    %c0_23 = arith.constant 0 : index
    %c10 = arith.constant 10 : index
    %c0_24 = arith.constant 0 : index
    %17 = vector.load %arg5[%c0_23, %c10, %c0_24] : memref<1x26x8xf32, #tpu.memory_space<vmem>>, vector<1x16x8xf32>
    %18 = arith.addf %16, %17 : vector<1x16x8xf32>
    %cst = arith.constant 2.000000e-01 : f32
    %19 = vector.broadcast %cst : f32 to vector<1x16x8xf32>
    %20 = arith.mulf %18, %19 : vector<1x16x8xf32>
    %c0_25 = arith.constant 0 : index
    %c0_26 = arith.constant 0 : index
    %c0_27 = arith.constant 0 : index
    %21 = vector.load %arg4[%c0_25, %c0_26, %c0_27] : memref<1x16x8xf32, #tpu.memory_space<vmem>>, vector<1x16x8xf32>
    tpu.vector_store %arg4[%c0_25, %c0_26, %c0_27], %20 {strides = array<i32>} : memref<1x16x8xf32, #tpu.memory_space<vmem>>, vector<1x16x8xf32>,
    %c0_28 = arith.constant 0 : index
    %c0_29 = arith.constant 0 : index
    %c0_30 = arith.constant 0 : index
    %22 = vector.load %arg2[%c0_28, %c0_29, %c0_30] : memref<1x16x8xf32, #tpu.memory_space<vmem>>, vector<1x16x8xf32>
    %23 = arith.subf %22, %20 : vector<1x16x8xf32>
    %c0_31 = arith.constant 0 : index
    %c0_32 = arith.constant 0 : index
    %c0_33 = arith.constant 0 : index
    %24 = vector.load %arg3[%c0_31, %c0_32, %c0_33] : memref<1x16x8xf32, #tpu.memory_space<vmem>>, vector<1x16x8xf32>
    tpu.vector_store %arg3[%c0_31, %c0_32, %c0_33], %23 {strides = array<i32>} : memref<1x16x8xf32, #tpu.memory_space<vmem>>, vector<1x16x8xf32>,
    return
  }
  func.func @transform_0(%arg0: i32, %arg1: i32) -> (i32, i32, i32) {
    %c0_i32 = arith.constant 0 : i32
    %c0_i32_0 = arith.constant 0 : i32
    return %arg0, %c0_i32, %arg1 : i32, i32, i32
  }
  func.func @transform_1(%arg0: i32, %arg1: i32) -> (i32, i32, i32) {
    %c0_i32 = arith.constant 0 : i32
    %c0_i32_0 = arith.constant 0 : i32
    return %arg0, %c0_i32, %arg1 : i32, i32, i32
  }
  func.func @transform_2(%arg0: i32, %arg1: i32) -> (i32, i32, i32) {
    %c0_i32 = arith.constant 0 : i32
    %c0_i32_0 = arith.constant 0 : i32
    return %arg0, %c0_i32, %arg1 : i32, i32, i32
  }
}

</mosaic_0001>

<llo_original>
// kernel: tpu_custom_call.1
$region0: #{tpu_custom_call.1}
  #allocation0 [shape = 'u32[]', space=smem, size = 0x4, offset = 0x4, fixed_abs, tag = 'smem constant byte address 0x4 - core index']
  #allocation1 [shape = 'u32[72,128]{1,0:T(1,128)}', space=vmem, size = 0x9000, scoped, tag = 'internal scratch']
  #allocation2 [shape = 'f32[1,26,8]{2,1,0:T(8,128)}', space=vmem, size = 0x4000, scoped, tag = 'scratch operand']
  %s0 = inlined_call_operand.vmem [shape: f32[2,16,8], index: 0, kind: input, shape index: {}]
  %s1 = inlined_call_operand.vmem [shape: f32[2,16,8], index: 1, kind: output, shape index: {0}]
  %s2 = inlined_call_operand.vmem [shape: f32[2,16,8], index: 2, kind: output, shape index: {1}]
  %3 = xla_tuple %s1, %s2
  %s4 = sld [smem:[#allocation0]]
  $region45: #{tpu_custom_call.1} parent=0
    _
  %s6 = ssub.s32 1, %s4
  %s7 = scalar_select 0, %s6, %s4
  loop: start=0, step=1, limit=4
  $region2: #{tpu_custom_call.1} parent=0 // loop_pre_header
    _
  $region3: #{tpu_custom_call.1} parent=0 // loop_header
    %s9 = sphi 0, %s13
    %p10 = scmp.ge.s32.totalorder %s9, 4
    %s16 = sphi 0, %s28
    %s17 = sphi 0, %s24
    %s18 = sphi 0, %s16
    %s19 = sphi 0, %s17
    %s20 = sphi 0, %s18
    %s21 = sphi 0, %s19
    %s33 = sphi 0, %s35
    %s36 = sphi 0, %s33
    %s37 = sphi 0, %s36
    %s53 = sphi 0, %s37
    %s61 = sphi 0, %s63
    %s64 = sphi 0, %s61
    %s65 = sphi 0, %s64
    %s81 = sphi 0, %s65
    %s89 = sphi 0, %s91
    %s92 = sphi 0, %s89
    %s93 = sphi 0, %s92
    %s109 = sphi 0, %s93
  $region4: #{tpu_custom_call.1} parent=0 // loop_header_branch
    %12 = sbr.rel (%p10) target = $region8
  $region5: #{tpu_custom_call.1} parent=0 // loop_body
    %s14 = ssub.s32 %s9, 1
    %s15 = ssub.s32 %s9, 2
    %s22 = sadd.s32 1, %s17
    %p23 = scmp.ge.s32.totalorder %s22, 1
    %s24 = scalar_select %p23, 0, %s22
    %s25 = sadd.s32 1, %s16
    %s26 = scalar_select %p23, %s25, %s16
    %p27 = scmp.ge.s32.totalorder %s26, 2
    %s28 = scalar_select %p27, 0, %s26
    %s29 = ssub.s32 %s16, %s28
    %s30 = ssub.s32 %s17, %s24
    %s31 = sor.u32 %s29, %s30
    %p32 = scmp.eq.s32.totalorder %s31, 0
    %s34 = sadd.s32 %s33, 1
    %s35 = scalar_select %p32, %s33, %s34
    %p38 = pneg %p32
    %p39 = scmp.eq.s32.totalorder %s9, 1
    %p40 = por %p38, %p39
    %p41 = scmp.ne.s32.totalorder %s33, %s36
    %p42 = scmp.eq.s32.totalorder %s9, 0
    %p43 = por %p41, %p42
    %p44 = scmp.ne.s32.totalorder %s33, %s36
    %p45 = scmp.eq.s32.totalorder %s14, 1
    %p46 = por %p44, %p45
    %p47 = scmp.ne.s32.totalorder %s36, %s37
    %p48 = scmp.eq.s32.totalorder %s14, 0
    %p49 = por %p47, %p48
    %p50 = scmp.ne.s32.totalorder %s36, %s37
    %p51 = scmp.eq.s32.totalorder %s15, 1
    %p52 = por %p50, %p51
    %p54 = scmp.ne.s32.totalorder %s37, %s53
    %p55 = scmp.eq.s32.totalorder %s15, 0
    %p56 = por %p54, %p55
    %s57 = ssub.s32 %s16, %s28
    %s58 = ssub.s32 %s17, %s24
    %s59 = sor.u32 %s57, %s58
    %p60 = scmp.eq.s32.totalorder %s59, 0
    %s62 = sadd.s32 %s61, 1
    %s63 = scalar_select %p60, %s61, %s62
    %p66 = pneg %p60
    %p67 = scmp.eq.s32.totalorder %s9, 1
    %p68 = por %p66, %p67
    %p69 = scmp.ne.s32.totalorder %s61, %s64
    %p70 = scmp.eq.s32.totalorder %s9, 0
    %p71 = por %p69, %p70
    %p72 = scmp.ne.s32.totalorder %s61, %s64
    %p73 = scmp.eq.s32.totalorder %s14, 1
    %p74 = por %p72, %p73
    %p75 = scmp.ne.s32.totalorder %s64, %s65
    %p76 = scmp.eq.s32.totalorder %s14, 0
    %p77 = por %p75, %p76
    %p78 = scmp.ne.s32.totalorder %s64, %s65
    %p79 = scmp.eq.s32.totalorder %s15, 1
    %p80 = por %p78, %p79
    %p82 = scmp.ne.s32.totalorder %s65, %s81
    %p83 = scmp.eq.s32.totalorder %s15, 0
    %p84 = por %p82, %p83
    %s85 = ssub.s32 %s16, %s28
    %s86 = ssub.s32 %s17, %s24
    %s87 = sor.u32 %s85, %s86
    %p88 = scmp.eq.s32.totalorder %s87, 0
    %s90 = sadd.s32 %s89, 1
    %s91 = scalar_select %p88, %s89, %s90
    %p94 = pneg %p88
    %p95 = scmp.eq.s32.totalorder %s9, 1
    %p96 = por %p94, %p95
    %p97 = scmp.ne.s32.totalorder %s89, %s92
    %p98 = scmp.eq.s32.totalorder %s9, 0
    %p99 = por %p97, %p98
    %p100 = scmp.ne.s32.totalorder %s89, %s92
    %p101 = scmp.eq.s32.totalorder %s14, 1
    %p102 = por %p100, %p101
    %p103 = scmp.ne.s32.totalorder %s92, %s93
    %p104 = scmp.eq.s32.totalorder %s14, 0
    %p105 = por %p103, %p104
    %p106 = scmp.ne.s32.totalorder %s92, %s93
    %p107 = scmp.eq.s32.totalorder %s15, 1
    %p108 = por %p106, %p107
    %p110 = scmp.ne.s32.totalorder %s93, %s109
    %p111 = scmp.eq.s32.totalorder %s15, 0
    %p112 = por %p110, %p111
    %p113 = scmp.le.s32.totalorder 1, %s9
    %p114 = scmp.lt.s32.totalorder %s9, 3
    %p115 = pnand %p113, %p114
    %p116 = pneg %p115
    // Predicated region
    $region9: #{tpu_custom_call.1} parent=5 // pred_check
      _
    $region10: #{tpu_custom_call.1} parent=5 // pred_check_branch
      %118 = sbr.rel (%p115) target = $region12
    $region11: #{tpu_custom_call.1} parent=5 // pred_region
      %s119 = ssub.s32 %s9, 1
    $region12: #{tpu_custom_call.1} parent=5 // pred_fallthru
      _
    %p120 = scmp.lt.s32.totalorder %s9, 2
    // Predicated region
    $region13: #{tpu_custom_call.1} parent=5 // pred_check
      %p121 = pneg %p120
    $region14: #{tpu_custom_call.1} parent=5 // pred_check_branch
      %123 = sbr.rel (%p121) target = $region16
    $region15: #{tpu_custom_call.1} parent=5 // pred_region
      // Predicated region
      $region17: #{tpu_custom_call.1} parent=15 // pred_check
        %p124 = pneg %p43
      $region18: #{tpu_custom_call.1} parent=15 // pred_check_branch
        %126 = sbr.rel (%p124) target = $region20
      $region19: #{tpu_custom_call.1} parent=15 // pred_region
        %p127 = scmp.lt.s32.totalorder %s16, 1
        %s128 = scalar_select %p127, %s16, 1
        %p129 = scmp.lt.s32.totalorder %s17, 0
        %s130 = scalar_select %p129, %s17, 0
        %s131 = smul.addr %s128, 2
        %s132 = sadd.s32 %s130, %s131
        %s133 = smul.addr %s132, 8
        %s134 = scalar_lea.vmem %s0, %s133
      $region20: #{tpu_custom_call.1} parent=15 // pred_fallthru
        _
    $region16: #{tpu_custom_call.1} parent=5 // pred_fallthru
      _
    %p135 = scmp.le.s32.totalorder 1, %s9
    %p136 = scmp.lt.s32.totalorder %s9, 3
    %p137 = pnand %p135, %p136
    %p138 = pneg %p137
    // Predicated region
    $region21: #{tpu_custom_call.1} parent=5 // pred_check
      _
    $region22: #{tpu_custom_call.1} parent=5 // pred_check_branch
      %140 = sbr.rel (%p137) target = $region24
    $region23: #{tpu_custom_call.1} parent=5 // pred_region
      %s141 = ssub.s32 %s9, 1
      %p142 = scmp.lt.s32.totalorder %s18, 1
      %s143 = scalar_select %p142, %s18, 1
      %p144 = scmp.lt.s32.totalorder %s19, 0
      %s145 = scalar_select %p144, %s19, 0
      %s146 = smul.addr %s143, 2
      %s147 = sadd.s32 %s145, %s146
      %s148 = smul.addr %s147, 8
      %s149 = scalar_lea.vmem %s0, %s148
      %p150 = pneg %p49
      %p151 = pneg %p46
      %p152 = pneg %p77
      %p153 = pneg %p74
      %p154 = scmp.lt.s32.totalorder %s18, 1
      %s155 = scalar_select %p154, %s18, 1
      %p156 = scmp.lt.s32.totalorder %s19, 0
      %s157 = scalar_select %p156, %s19, 0
      %s158 = smul.addr %s155, 2
      %s159 = sadd.s32 %s157, %s158
      %s160 = smul.addr %s159, 8
      %s161 = scalar_lea.vmem %s1, %s160
      %p162 = pneg %p105
      %p163 = pneg %p102
      %p164 = scmp.lt.s32.totalorder %s18, 1
      %s165 = scalar_select %p164, %s18, 1
      %p166 = scmp.lt.s32.totalorder %s19, 0
      %s167 = scalar_select %p166, %s19, 0
      %s168 = smul.addr %s165, 2
      %s169 = sadd.s32 %s167, %s168
      %s170 = smul.addr %s169, 8
      %s171 = scalar_lea.vmem %s2, %s170
      %p172 = scmp.lt.s32.totalorder %s18, 1
      %s173 = scalar_select %p172, %s18, 1
      %p174 = scmp.lt.s32.totalorder %s19, 0
      %s175 = scalar_select %p174, %s19, 0
      %s176 = smul.addr %s173, 2
      %s177 = sadd.s32 %s175, %s176
      %s178 = smul.addr %s177, 8
      %s179 = scalar_lea.vmem %s0, %s178
      %p180 = scmp.lt.s32.totalorder %s18, 1
      %s181 = scalar_select %p180, %s18, 1
      %p182 = scmp.lt.s32.totalorder %s19, 0
      %s183 = scalar_select %p182, %s19, 0
      %s184 = smul.addr %s181, 2
      %s185 = sadd.s32 %s183, %s184
      %s186 = smul.addr %s185, 8
      %s187 = scalar_lea.vmem %s1, %s186
      %p188 = scmp.lt.s32.totalorder %s18, 1
      %s189 = scalar_select %p188, %s18, 1
      %p190 = scmp.lt.s32.totalorder %s19, 0
      %s191 = scalar_select %p190, %s19, 0
      %s192 = smul.addr %s189, 2
      %s193 = sadd.s32 %s191, %s192
      %s194 = smul.addr %s193, 8
      %s195 = scalar_lea.vmem %s2, %s194
      %v196 = vld [vmem:[%s179] sm:$0xff]
      %v197 = vld [vmem:[%s179 + $0x8] sm:$0xff]
      %vm198 = vcmask 64512
      %199 = vst.msk [vmem:[#allocation2 + $0x8] sm:$0xff] %vm198, %v196
      %200 = vst.msk [vmem:[#allocation2 + $0x10] sm:$0xff] %vm198, %v197
      %v201 = vld [vmem:[%s179] sm:$0x1]
      %v202 = vld [vmem:[%s179 + $0xf] sm:$0x1]
      %v203 = vperm.slane %v201, 0
      %vm204 = vcmask 58368
      %205 = vst.msk [vmem:[#allocation2 + $0x6] sm:$0x3] %vm204, %v203
      %v206 = vperm.slane %v202, 0
      %207 = vst.msk [vmem:[#allocation2 + $0x18] sm:$0x3] %vm204, %v206
      %v208 = vld [vmem:[#allocation2 + $0x6] sm:$0xff]
      %v209 = vld [vmem:[#allocation2 + $0xe] sm:$0xff]
      %v210 = vld [vmem:[#allocation2 + $0x7] sm:$0xff]
      %v211 = vld [vmem:[#allocation2 + $0xf] sm:$0xff]
      %v212 = vadd.f32 %v208, %v210
      %v213 = vadd.f32 %v209, %v211
      %v214 = vld [vmem:[#allocation2 + $0x8] sm:$0xff]
      %v215 = vld [vmem:[#allocation2 + $0x10] sm:$0xff]
      %v216 = vadd.f32 %v212, %v214
      %v217 = vadd.f32 %v213, %v215
      %v218 = vld [vmem:[#allocation2 + $0x9] sm:$0xff]
      %v219 = vld [vmem:[#allocation2 + $0x11] sm:$0xff]
      %v220 = vadd.f32 %v216, %v218
      %v221 = vadd.f32 %v217, %v219
      %v222 = vld [vmem:[#allocation2 + $0xa] sm:$0xff]
      %v223 = vld [vmem:[#allocation2 + $0x12] sm:$0xff]
      %v224 = vadd.f32 %v220, %v222
      %v225 = vadd.f32 %v221, %v223
      %v226 = vmul.f32 %v224, 0.2
      %v227 = vmul.f32 %v225, 0.2
      %228 = vst.msk [vmem:[%s195] sm:$0xff] %vm198, %v226
      %229 = vst.msk [vmem:[%s195 + $0x8] sm:$0xff] %vm198, %v227
      %v230 = vld [vmem:[%s179] sm:$0xff]
      %v231 = vld [vmem:[%s179 + $0x8] sm:$0xff]
      %v232 = vsub.f32 %v230, %v226
      %v233 = vsub.f32 %v231, %v227
      %234 = vst.msk [vmem:[%s187] sm:$0xff] %vm198, %v232
      %235 = vst.msk [vmem:[%s187 + $0x8] sm:$0xff] %vm198, %v233
      %p236 = scmp.lt.s32.totalorder %s18, 1
      %s237 = scalar_select %p236, %s18, 1
      %p238 = scmp.lt.s32.totalorder %s19, 0
      %s239 = scalar_select %p238, %s19, 0
      %s240 = smul.addr %s237, 2
      %s241 = sadd.s32 %s239, %s240
      %s242 = smul.addr %s241, 8
      %s243 = scalar_lea.vmem %s1, %s242
      %p244 = scmp.lt.s32.totalorder %s18, 1
      %s245 = scalar_select %p244, %s18, 1
      %p246 = scmp.lt.s32.totalorder %s19, 0
      %s247 = scalar_select %p246, %s19, 0
      %s248 = smul.addr %s245, 2
      %s249 = sadd.s32 %s247, %s248
      %s250 = smul.addr %s249, 8
      %s251 = scalar_lea.vmem %s2, %s250
      // Predicated region
      $region25: #{tpu_custom_call.1} parent=23 // pred_check
        %p252 = pneg %p74
      $region26: #{tpu_custom_call.1} parent=23 // pred_check_branch
        %254 = sbr.rel (%p252) target = $region28
      $region27: #{tpu_custom_call.1} parent=23 // pred_region
        _
      $region28: #{tpu_custom_call.1} parent=23 // pred_fallthru
        _
      // Predicated region
      $region29: #{tpu_custom_call.1} parent=23 // pred_check
        %p255 = pneg %p102
      $region30: #{tpu_custom_call.1} parent=23 // pred_check_branch
        %257 = sbr.rel (%p255) target = $region32
      $region31: #{tpu_custom_call.1} parent=23 // pred_region
        _
      $region32: #{tpu_custom_call.1} parent=23 // pred_fallthru
        _
    $region24: #{tpu_custom_call.1} parent=5 // pred_fallthru
      _
    %p258 = scmp.le.s32.totalorder 2, %s9
    // Predicated region
    $region33: #{tpu_custom_call.1} parent=5 // pred_check
      %p259 = pneg %p258
    $region34: #{tpu_custom_call.1} parent=5 // pred_check_branch
      %261 = sbr.rel (%p259) target = $region36
    $region35: #{tpu_custom_call.1} parent=5 // pred_region
      %s262 = ssub.s32 %s9, 2
      // Predicated region
      $region37: #{tpu_custom_call.1} parent=35 // pred_check
        %p263 = pneg %p80
      $region38: #{tpu_custom_call.1} parent=35 // pred_check_branch
        %265 = sbr.rel (%p263) target = $region40
      $region39: #{tpu_custom_call.1} parent=35 // pred_region
        %p266 = scmp.lt.s32.totalorder %s20, 1
        %s267 = scalar_select %p266, %s20, 1
        %p268 = scmp.lt.s32.totalorder %s21, 0
        %s269 = scalar_select %p268, %s21, 0
        %s270 = smul.addr %s267, 2
        %s271 = sadd.s32 %s269, %s270
        %s272 = smul.addr %s271, 8
        %s273 = scalar_lea.vmem %s1, %s272
      $region40: #{tpu_custom_call.1} parent=35 // pred_fallthru
        _
      // Predicated region
      $region41: #{tpu_custom_call.1} parent=35 // pred_check
        %p274 = pneg %p108
      $region42: #{tpu_custom_call.1} parent=35 // pred_check_branch
        %276 = sbr.rel (%p274) target = $region44
      $region43: #{tpu_custom_call.1} parent=35 // pred_region
        %p277 = scmp.lt.s32.totalorder %s20, 1
        %s278 = scalar_select %p277, %s20, 1
        %p279 = scmp.lt.s32.totalorder %s21, 0
        %s280 = scalar_select %p279, %s21, 0
        %s281 = smul.addr %s278, 2
        %s282 = sadd.s32 %s280, %s281
        %s283 = smul.addr %s282, 8
        %s284 = scalar_lea.vmem %s2, %s283
      $region44: #{tpu_custom_call.1} parent=35 // pred_fallthru
        _
    $region36: #{tpu_custom_call.1} parent=5 // pred_fallthru
      _
  $region6: #{tpu_custom_call.1} parent=0 // loop_footer
    %s13 = sadd.s32 1, %s9
  $region7: #{tpu_custom_call.1} parent=0 // loop_footer_branch
    %8 = sbr.rel target = $region3
  $region8: #{tpu_custom_call.1} parent=0 // loop_exit
    _

</llo_original>
